<compile_context>
chip_gen: v7x
topology: tpu7x:2x2x1
jax: 0.10.0
libtpu: 0.0.40
codegen_flags: <defaults>
</compile_context>

<pallas_src>
import functools
import math

import jax
import jax.numpy as jnp
from jax.experimental import pallas as pl
from jax.experimental.pallas import tpu as pltpu


def _round_up(x: int, m: int) -> int:
    return ((x + m - 1) // m) * m


def _pick_batch_tile(batch: int, target: int = 1024) -> int:
    """Sublane-aligned batch tile.

    Small batches -> a single full-batch block (no padding at all).
    Larger batches -> an EVEN number of tiles (>= 2) so both v7x TensorCores
    get balanced work under dimension_semantics=("parallel",) and there are
    >= 2 grid steps for DMA/compute pipelining.  Per-tile rows are capped
    near `target`, keeping per-step VMEM a few MiB at most (safe on v7x).
    """
    if batch < 64:
        return batch
    n_tiles = 2 * max(1, -(-batch // (2 * target)))      # even, >= 2
    return _round_up(-(-batch // n_tiles), 8)


# --------------------------------------------------------------------------
# Kernel
# --------------------------------------------------------------------------
def _pad_lanes(a, k):
    """Zero-pad the last (lane) dim of a value up to k (static no-op if equal)."""
    cur = a.shape[-1]
    if cur == k:
        return a
    pad = jnp.zeros(a.shape[:-1] + (k - cur,), a.dtype)
    return jnp.concatenate([a, pad], axis=-1)


def _emstyle_mlp_kernel(x_ref, w_ref, b_ref, o_ref, *,
                        layer_mats, width, act, crelu_single, compute_dtype):
    """Whole MLP forward for one batch tile, entirely on-chip.

    x_ref : (tb, d_in)        input dtype (cast to compute_dtype in-kernel)
    w_ref : (K_total, n_pad)  compute_dtype -- all layer matrices row-concatenated
    b_ref : (n_layers, n_pad) float32      -- all biases
    o_ref : (tb, width)       output dtype (masked lane stores if width < 128)
    """
    n_layers = len(layer_mats)
    parts = [x_ref[...].astype(compute_dtype)]      # tensors feeding the next matmul
    for li, mats in enumerate(layer_mats):
        acc = None
        for (off, k), p in zip(mats, parts):
            p = _pad_lanes(p, k)                     # static; usually a no-op
            c = jnp.dot(p, w_ref[off:off + k, :],    # static, sublane-aligned slice
                        preferred_element_type=jnp.float32)
            acc = c if acc is None else acc + c
        z = acc + b_ref[li:li + 1, :]                # f32 bias add; padded lanes stay 0
        if li == n_layers - 1:
            # NOTE: batch-padding rows hold bias-only values here; the wrapper
            # slices them off.  Narrow (width-lane) store -> 4x less writeback.
            o_ref[...] = z[:, :o_ref.shape[-1]].astype(o_ref.dtype)
        elif act == "relu":
            parts = [jnp.maximum(z, 0.0).astype(compute_dtype)]
        elif crelu_single:
            # crelu in ONE matmul: relu(z) | relu(-z) packed into adjacent lanes,
            # matching the single (2*width, n_pad) weight block.
            pos = jnp.maximum(z[:, :width], 0.0)
            neg = jnp.maximum(-z[:, :width], 0.0)
            parts = [jnp.concatenate([pos, neg], axis=-1).astype(compute_dtype)]
        else:
            # crelu fallback (2*width > 128): split-weight form, two MXU pushes.
            parts = [jnp.maximum(z, 0.0).astype(compute_dtype),
                     jnp.maximum(-z, 0.0).astype(compute_dtype)]


# --------------------------------------------------------------------------
# Parameter packing (single resident weight block + single bias block)
# --------------------------------------------------------------------------
def pack_emstyle_params(params, act="relu", compute_dtype=jnp.bfloat16):
    """params: list of (W, b) with W: (in_i, out_i), b: (1, out_i) or (out_i,)."""
    d_in = int(params[0][0].shape[0])
    width = int(params[-1][0].shape[1])
    n_pad = _round_up(width, 128)
    crelu_single = (act == "crelu") and (2 * width <= n_pad)

    mats, biases, layer_mats = [], [], []
    off = 0
    for i, (w, b) in enumerate(params):
        w = jnp.asarray(w, jnp.float32)
        b = jnp.asarray(b, jnp.float32).reshape(-1)
        if w.shape[1] != width:
            raise ValueError("EMstyle packing expects out_features == width for every layer")
        if i == 0:
            subs = [(w, _round_up(d_in, 8))]                     # input layer, K = d_in
        elif act == "relu":
            subs = [(w, n_pad)]
        elif crelu_single:
            subs = [(w, _round_up(2 * width, 8))]                # rows [0,w)=W+, [w,2w)=W-
        else:
            subs = [(w[:width], n_pad), (w[width:], n_pad)]      # split-weight fallback
        spec = []
        for s, k in subs:
            s_p = jnp.zeros((k, n_pad), jnp.float32).at[: s.shape[0], : s.shape[1]].set(s)
            mats.append(s_p)
            spec.append((off, k))
            off += k
        layer_mats.append(tuple(spec))
        biases.append(jnp.zeros((n_pad,), jnp.float32).at[: b.shape[0]].set(b))

    return dict(
        w=jnp.concatenate(mats, axis=0).astype(compute_dtype),   # (K_total, n_pad)
        b=jnp.stack(biases, axis=0),                             # (n_layers, n_pad) f32
        layer_mats=tuple(layer_mats),
        d_in=d_in, width=width, n_pad=n_pad,
        act=act, crelu_single=crelu_single, compute_dtype=compute_dtype,
    )


# --------------------------------------------------------------------------
# Forward wrapper
# --------------------------------------------------------------------------
def emstyle_forward_packed(x, packed, batch_tile=None):
    B, d_in = x.shape
    if d_in != packed["d_in"]:
        raise ValueError(f"x has {d_in} features, params expect {packed['d_in']}")
    width, n_pad = packed["width"], packed["n_pad"]
    compute_dtype = packed["compute_dtype"]

    if batch_tile is None:
        tb = _pick_batch_tile(B)
    else:
        tb = B if int(batch_tile) >= B else _round_up(int(batch_tile), 8)
    b_pad = B if tb == B else _round_up(B, tb)
    grid = (b_pad // tb,)

    # Rows-only pad, no lane pad, no dtype cast: the cast to compute_dtype
    # happens inside the kernel, so the input HBM path stays B x d_in bytes.
    x_in = x if b_pad == B else jnp.pad(x, ((0, b_pad - B), (0, 0)))

    w_packed, b_packed = packed["w"], packed["b"]
    out_dtype = x.dtype

    flops = 2 * b_pad * sum(k * n_pad for mats in packed["layer_mats"] for _, k in mats)
    bytes_accessed = (x_in.size * x_in.dtype.itemsize
                      + w_packed.size * w_packed.dtype.itemsize
                      + b_packed.size * 4
                      + b_pad * width * jnp.dtype(out_dtype).itemsize)

    kernel = functools.partial(
        _emstyle_mlp_kernel,
        layer_mats=packed["layer_mats"],
        width=width,
        act=packed["act"],
        crelu_single=packed["crelu_single"],
        compute_dtype=compute_dtype,
    )

    out = pl.pallas_call(
        kernel,
        out_shape=jax.ShapeDtypeStruct((b_pad, width), out_dtype),
        grid_spec=pltpu.PrefetchScalarGridSpec(
            num_scalar_prefetch=0,
            grid=grid,
            in_specs=[
                pl.BlockSpec((tb, d_in), lambda i: (i, 0)),       # unpadded input tile
                pl.BlockSpec(w_packed.shape, lambda i: (0, 0)),   # resident packed weights
                pl.BlockSpec(b_packed.shape, lambda i: (0, 0)),   # resident packed biases
            ],
            out_specs=pl.BlockSpec((tb, width), lambda i: (i, 0)),  # narrow output block
        ),
        compiler_params=pltpu.CompilerParams(
            dimension_semantics=("parallel",)),
        cost_estimate=pl.CostEstimate(
            flops=int(flops), transcendentals=0, bytes_accessed=int(bytes_accessed)),
    )(x_in, w_packed, b_packed)

    return out if b_pad == B else out[:B]


def emstyle_forward(x, params, act="relu", compute_dtype=jnp.bfloat16, batch_tile=None):
    packed = pack_emstyle_params(params, act=act, compute_dtype=compute_dtype)
    return emstyle_forward_packed(x, packed, batch_tile=batch_tile)


# --------------------------------------------------------------------------
# Init + pure-JAX reference
# --------------------------------------------------------------------------
def init_emstyle_params(key, dim_state, dim_act, depth=3, width=32, act="relu"):
    """PyTorch-Linear-style init (uniform +-1/sqrt(fan_in)); W: (in, out), b: (1, out)."""
    dims_in, dims_out = [], []
    d_in = dim_state + dim_act
    for _ in range(depth):
        dims_in.append(d_in)
        dims_out.append(width)
        d_in = width * (2 if act == "crelu" else 1)
    dims_in.append(d_in)            # output layer (dim_out == width for EMstyle)
    dims_out.append(width)

    params = []
    for din, dout in zip(dims_in, dims_out):
        key, kw, kb = jax.random.split(key, 3)
        bound = 1.0 / math.sqrt(din)
        w = jax.random.uniform(kw, (din, dout), jnp.float32, -bound, bound)
        b = jax.random.uniform(kb, (1, dout), jnp.float32, -bound, bound)
        params.append((w, b))
    return params


def emstyle_reference(x, params, act="relu", compute_dtype=jnp.float32):
    """Pure-JAX reference with the same dtype policy as the kernel."""
    h = x.astype(jnp.float32)
    n = len(params)
    for i, (w, b) in enumerate(params):
        z = jnp.dot(h.astype(compute_dtype),
                    jnp.asarray(w, jnp.float32).astype(compute_dtype),
                    preferred_element_type=jnp.float32)
        z = z + jnp.asarray(b, jnp.float32).reshape(-1)
        if i < n - 1:
            if act == "relu":
                h = jnp.maximum(z, 0.0)
            else:
                h = jnp.concatenate([jnp.maximum(z, 0.0), jnp.maximum(-z, 0.0)], axis=-1)
        else:
            h = z
    return h.astype(x.dtype)


# TODO(synk): has_norm=True (LayerNorm between Linear and activation) is not
# implemented; the module default (has_norm=False) is what is reproduced here.

if __name__ == "__main__":
    dim_state, dim_act = 20, 12          # dim_in = 32
    depth, width = 3, 32
    batch = 10                           # deliberately NOT a multiple of 8

    key = jax.random.PRNGKey(0)
    key, kx = jax.random.split(key)
    x = jax.random.normal(kx, (batch, dim_state + dim_act), jnp.float32)

    # 1) relu, f32 compute (validation path), explicit small batch tile ->
    #    2-step grid with a row-padded final tile + masked narrow output stores.
    #    Tolerance is loose because XLA's default-precision f32 dot on TPU may
    #    use bf16 MXU passes while the kernel's f32 matmul may not match exactly.
    params = init_emstyle_params(key, dim_state, dim_act, depth, width, "relu")
    out = emstyle_forward(x, params, act="relu",
                          compute_dtype=jnp.float32, batch_tile=8)
    out = jax.block_until_ready(out)
    ref = emstyle_reference(x, params, act="relu", compute_dtype=jnp.float32)
    assert out.shape == (batch, width)
    assert jnp.allclose(out, ref, atol=1e-2, rtol=1e-2), "relu/f32 mismatch vs reference"

    # 2) crelu, bf16 matmul inputs + f32 accumulation (single-matmul crelu path,
    #    full-batch single block -> zero padding anywhere).
    params_c = init_emstyle_params(key, dim_state, dim_act, depth, width, "crelu")
    out_c = emstyle_forward(x, params_c, act="crelu", compute_dtype=jnp.bfloat16)
    out_c = jax.block_until_ready(out_c)
    ref_c = emstyle_reference(x, params_c, act="crelu", compute_dtype=jnp.bfloat16)
    assert out_c.shape == (batch, width)
    assert jnp.allclose(out_c, ref_c, atol=2e-3, rtol=2e-3), "crelu/bf16 mismatch vs reference"

    print("KERNEL_OK")
</pallas_src>

<mosaic_0001>
module attributes {stable_mosaic.version = 11 : i64} {
  func.func @_emstyle_mlp_kernel(%arg0: i32, %arg1: memref<8x32xf32, #tpu.memory_space<vmem>>, %arg2: memref<416x128xf32, #tpu.memory_space<vmem>>, %arg3: memref<4x128xf32, #tpu.memory_space<vmem>>, %arg4: memref<8x32xf32, #tpu.memory_space<vmem>>) attributes {dimension_semantics = [#tpu.dimension_semantics<parallel>], iteration_bounds = array<i64: 2>, scalar_prefetch = 0 : i64, scratch_operands = 0 : i64, tpu.core_type = #tpu.core_type<tc>, window_params = [{transform_indices = @transform_0, window_bounds = array<i64: 8, 32>}, {pipeline_mode = #tpu.pipeline_mode<synchronous>, transform_indices = @transform_1, window_bounds = array<i64: 416, 128>}, {pipeline_mode = #tpu.pipeline_mode<synchronous>, transform_indices = @transform_2, window_bounds = array<i64: 4, 128>}, {transform_indices = @transform_3, window_bounds = array<i64: 8, 32>}]} {
    %c0 = arith.constant 0 : index
    %c0_0 = arith.constant 0 : index
    %0 = vector.load %arg1[%c0, %c0_0] : memref<8x32xf32, #tpu.memory_space<vmem>>, vector<8x32xf32>
    %c0_1 = arith.constant 0 : index
    %c0_2 = arith.constant 0 : index
    %1 = vector.load %arg2[%c0_1, %c0_2] : memref<416x128xf32, #tpu.memory_space<vmem>>, vector<32x128xf32>
    %cst = arith.constant dense<0.000000e+00> : vector<8x128xf32>
    %2 = tpu.matmul %0, %1, %cst {dimension_numbers = #tpu.dot_dimension_numbers<[1], [0], [0], [1], [0, 0, 1, 1], [], []>} : vector<8x32xf32>, vector<32x128xf32>, vector<8x128xf32> -> vector<8x128xf32>
    %c0_3 = arith.constant 0 : index
    %c0_4 = arith.constant 0 : index
    %3 = vector.load %arg3[%c0_3, %c0_4] : memref<4x128xf32, #tpu.memory_space<vmem>>, vector<1x128xf32>
    %4 = vector.broadcast %3 : vector<1x128xf32> to vector<8x128xf32>
    %5 = arith.addf %2, %4 : vector<8x128xf32>
    %cst_5 = arith.constant 0.000000e+00 : f32
    %6 = vector.broadcast %cst_5 : f32 to vector<8x128xf32>
    %7 = arith.maximumf %5, %6 : vector<8x128xf32>
    %c32 = arith.constant 32 : index
    %c0_6 = arith.constant 0 : index
    %8 = vector.load %arg2[%c32, %c0_6] : memref<416x128xf32, #tpu.memory_space<vmem>>, vector<128x128xf32>
    %cst_7 = arith.constant dense<0.000000e+00> : vector<8x128xf32>
    %9 = tpu.matmul %7, %8, %cst_7 {dimension_numbers = #tpu.dot_dimension_numbers<[1], [0], [0], [1], [0, 0, 1, 1], [], []>} : vector<8x128xf32>, vector<128x128xf32>, vector<8x128xf32> -> vector<8x128xf32>
    %c1 = arith.constant 1 : index
    %c0_8 = arith.constant 0 : index
    %10 = vector.load %arg3[%c1, %c0_8] : memref<4x128xf32, #tpu.memory_space<vmem>>, vector<1x128xf32>
    %11 = vector.broadcast %10 : vector<1x128xf32> to vector<8x128xf32>
    %12 = arith.addf %9, %11 : vector<8x128xf32>
    %cst_9 = arith.constant 0.000000e+00 : f32
    %13 = vector.broadcast %cst_9 : f32 to vector<8x128xf32>
    %14 = arith.maximumf %12, %13 : vector<8x128xf32>
    %c160 = arith.constant 160 : index
    %c0_10 = arith.constant 0 : index
    %15 = vector.load %arg2[%c160, %c0_10] : memref<416x128xf32, #tpu.memory_space<vmem>>, vector<128x128xf32>
    %cst_11 = arith.constant dense<0.000000e+00> : vector<8x128xf32>
    %16 = tpu.matmul %14, %15, %cst_11 {dimension_numbers = #tpu.dot_dimension_numbers<[1], [0], [0], [1], [0, 0, 1, 1], [], []>} : vector<8x128xf32>, vector<128x128xf32>, vector<8x128xf32> -> vector<8x128xf32>
    %c2 = arith.constant 2 : index
    %c0_12 = arith.constant 0 : index
    %17 = vector.load %arg3[%c2, %c0_12] : memref<4x128xf32, #tpu.memory_space<vmem>>, vector<1x128xf32>
    %18 = vector.broadcast %17 : vector<1x128xf32> to vector<8x128xf32>
    %19 = arith.addf %16, %18 : vector<8x128xf32>
    %cst_13 = arith.constant 0.000000e+00 : f32
    %20 = vector.broadcast %cst_13 : f32 to vector<8x128xf32>
    %21 = arith.maximumf %19, %20 : vector<8x128xf32>
    %c288 = arith.constant 288 : index
    %c0_14 = arith.constant 0 : index
    %22 = vector.load %arg2[%c288, %c0_14] : memref<416x128xf32, #tpu.memory_space<vmem>>, vector<128x128xf32>
    %cst_15 = arith.constant dense<0.000000e+00> : vector<8x128xf32>
    %23 = tpu.matmul %21, %22, %cst_15 {dimension_numbers = #tpu.dot_dimension_numbers<[1], [0], [0], [1], [0, 0, 1, 1], [], []>} : vector<8x128xf32>, vector<128x128xf32>, vector<8x128xf32> -> vector<8x128xf32>
    %c3 = arith.constant 3 : index
    %c0_16 = arith.constant 0 : index
    %24 = vector.load %arg3[%c3, %c0_16] : memref<4x128xf32, #tpu.memory_space<vmem>>, vector<1x128xf32>
    %25 = vector.broadcast %24 : vector<1x128xf32> to vector<8x128xf32>
    %26 = arith.addf %23, %25 : vector<8x128xf32>
    %27 = vector.extract_strided_slice %26 {offsets = [0, 0], sizes = [8, 32], strides = [1, 1]} : vector<8x128xf32> to vector<8x32xf32>
    %c0_17 = arith.constant 0 : index
    %c0_18 = arith.constant 0 : index
    %28 = vector.load %arg4[%c0_17, %c0_18] : memref<8x32xf32, #tpu.memory_space<vmem>>, vector<8x32xf32>
    tpu.vector_store %arg4[%c0_17, %c0_18], %27 {strides = array<i32>} : memref<8x32xf32, #tpu.memory_space<vmem>>, vector<8x32xf32>,
    return
  }
  func.func @transform_0(%arg0: i32) -> (i32, i32) {
    %c0_i32 = arith.constant 0 : i32
    %c0_i32_0 = arith.constant 0 : i32
    return %arg0, %c0_i32 : i32, i32
  }
  func.func @transform_1(%arg0: i32) -> (i32, i32) {
    %c0_i32 = arith.constant 0 : i32
    %c0_i32_0 = arith.constant 0 : i32
    %c0_i32_1 = arith.constant 0 : i32
    return %c0_i32, %c0_i32_0 : i32, i32
  }
  func.func @transform_2(%arg0: i32) -> (i32, i32) {
    %c0_i32 = arith.constant 0 : i32
    %c0_i32_0 = arith.constant 0 : i32
    %c0_i32_1 = arith.constant 0 : i32
    return %c0_i32, %c0_i32_0 : i32, i32
  }
  func.func @transform_3(%arg0: i32) -> (i32, i32) {
    %c0_i32 = arith.constant 0 : i32
    %c0_i32_0 = arith.constant 0 : i32
    return %arg0, %c0_i32 : i32, i32
  }
}

</mosaic_0001>

<llo_original>
// kernel: tpu_custom_call.1
$region0: #{tpu_custom_call.1}
  #allocation0 [shape = 'u32[]', space=smem, size = 0x4, offset = 0x4, fixed_abs, tag = 'smem constant byte address 0x4 - core index']
  #allocation1 [shape = 'u32[144,128]{1,0:T(1,128)}', space=vmem, size = 0x12000, scoped, tag = 'internal scratch']
  %s0 = inlined_call_operand.hbm [shape: f32[16,32], index: 0, kind: input, shape index: {}]
  %s1 = inlined_call_operand.hbm [shape: f32[416,128], index: 1, kind: input, shape index: {}]
  %s2 = inlined_call_operand.vmem [shape: f32[4,128], index: 2, kind: input, shape index: {}]
  %s3 = inlined_call_operand.hbm [shape: f32[16,32], index: 3, kind: output, shape index: {}]
  %s4 = sld [smem:[#allocation0]]
  $region53: #{tpu_custom_call.1} parent=0
    _
  %s6 = ssub.s32 1, %s4
  %s7 = scalar_select 0, %s6, %s4
  $region1: #{tpu_custom_call.1} parent=0
    #allocation2 [shape = 'u8[8192]{0}', space=vmem, size = 0x2000, scoped, tag = 'input window, operand 0']
    #allocation3 [shape = 's32[2]{0}', space=sflag, size = 0x8, scoped, tag = 'scoped memory for tpu_custom_call.1']
    #allocation4 [shape = 's32[2]{0}', space=sflag, size = 0x8, scoped, tag = 'scoped memory for tpu_custom_call.1']
    #allocation5 [shape = 'u8[212992]{0}', space=vmem, size = 0x34000, scoped, tag = 'input window, operand 1, single buffered']
    #allocation6 [shape = 's32[1]{0}', space=sflag, size = 0x4, scoped, tag = 'scoped memory for tpu_custom_call.1']
    #allocation7 [shape = 'u8[8192]{0}', space=vmem, size = 0x2000, scoped, tag = 'output window, operand 0']
    %8 = vsyncpa [#allocation3], 0
    %s9 = scalar_lea.sflag [#allocation3], 1
    %10 = vsyncpa %s9, 0
    %11 = vsyncpa [#allocation6], 0
    %12 = vsyncpa [#allocation4], 0
    %s13 = scalar_lea.sflag [#allocation4], 1
    %14 = vsyncpa %s13, 0
    loop: start=0, step=1, limit=4
    $region2: #{tpu_custom_call.1} parent=1 // loop_pre_header
      _
    $region3: #{tpu_custom_call.1} parent=1 // loop_header
      %s16 = sphi 0, %s20
      %p17 = scmp.ge.s32.totalorder %s16, 4
      %s26 = sphi 0, %s28
      %s29 = sphi 0, %s26
      %s30 = sphi 0, %s29
      %s46 = sphi 0, %s30
      %s50 = sphi 0, %s50
      %s52 = sphi 0, %s50
      %s53 = sphi 0, %s52
      %s67 = sphi 0, %s53
      %s71 = sphi 0, %s71
      %s73 = sphi 0, %s71
      %s74 = sphi 0, %s73
      %s88 = sphi 0, %s74
      %s94 = sphi 0, %s96
      %s97 = sphi 0, %s94
      %s98 = sphi 0, %s97
      %s114 = sphi 0, %s98
    $region4: #{tpu_custom_call.1} parent=1 // loop_header_branch
      %19 = sbr.rel (%p17) target = $region8
    $region5: #{tpu_custom_call.1} parent=1 // loop_body
      %s21 = ssub.s32 %s16, 1
      %s22 = ssub.s32 %s16, 2
      %s23 = sadd.s32 %s16, 1
      %s24 = ssub.s32 %s16, %s23
      %p25 = scmp.eq.s32.totalorder %s24, 0
      %s27 = sadd.s32 %s26, 1
      %s28 = scalar_select %p25, %s26, %s27
      %p31 = pneg %p25
      %p32 = scmp.eq.s32.totalorder %s16, 1
      %p33 = por %p31, %p32
      %p34 = scmp.ne.s32.totalorder %s26, %s29
      %p35 = scmp.eq.s32.totalorder %s16, 0
      %p36 = por %p34, %p35
      %p37 = scmp.ne.s32.totalorder %s26, %s29
      %p38 = scmp.eq.s32.totalorder %s21, 1
      %p39 = por %p37, %p38
      %p40 = scmp.ne.s32.totalorder %s29, %s30
      %p41 = scmp.eq.s32.totalorder %s21, 0
      %p42 = por %p40, %p41
      %p43 = scmp.ne.s32.totalorder %s29, %s30
      %p44 = scmp.eq.s32.totalorder %s22, 1
      %p45 = por %p43, %p44
      %p47 = scmp.ne.s32.totalorder %s30, %s46
      %p48 = scmp.eq.s32.totalorder %s22, 0
      %p49 = por %p47, %p48
      %s51 = sadd.s32 %s50, 1
      %p54 = scmp.eq.s32.totalorder %s16, 1
      %p55 = scmp.ne.s32.totalorder %s50, %s52
      %p56 = scmp.eq.s32.totalorder %s16, 0
      %p57 = por %p55, %p56
      %p58 = scmp.ne.s32.totalorder %s50, %s52
      %p59 = scmp.eq.s32.totalorder %s21, 1
      %p60 = por %p58, %p59
      %p61 = scmp.ne.s32.totalorder %s52, %s53
      %p62 = scmp.eq.s32.totalorder %s21, 0
      %p63 = por %p61, %p62
      %p64 = scmp.ne.s32.totalorder %s52, %s53
      %p65 = scmp.eq.s32.totalorder %s22, 1
      %p66 = por %p64, %p65
      %p68 = scmp.ne.s32.totalorder %s53, %s67
      %p69 = scmp.eq.s32.totalorder %s22, 0
      %p70 = por %p68, %p69
      %s72 = sadd.s32 %s71, 1
      %p75 = scmp.eq.s32.totalorder %s16, 1
      %p76 = scmp.ne.s32.totalorder %s71, %s73
      %p77 = scmp.eq.s32.totalorder %s16, 0
      %p78 = por %p76, %p77
      %p79 = scmp.ne.s32.totalorder %s71, %s73
      %p80 = scmp.eq.s32.totalorder %s21, 1
      %p81 = por %p79, %p80
      %p82 = scmp.ne.s32.totalorder %s73, %s74
      %p83 = scmp.eq.s32.totalorder %s21, 0
      %p84 = por %p82, %p83
      %p85 = scmp.ne.s32.totalorder %s73, %s74
      %p86 = scmp.eq.s32.totalorder %s22, 1
      %p87 = por %p85, %p86
      %p89 = scmp.ne.s32.totalorder %s74, %s88
      %p90 = scmp.eq.s32.totalorder %s22, 0
      %p91 = por %p89, %p90
      %s92 = ssub.s32 %s16, %s23
      %p93 = scmp.eq.s32.totalorder %s92, 0
      %s95 = sadd.s32 %s94, 1
      %s96 = scalar_select %p93, %s94, %s95
      %p99 = pneg %p93
      %p100 = scmp.eq.s32.totalorder %s16, 1
      %p101 = por %p99, %p100
      %p102 = scmp.ne.s32.totalorder %s94, %s97
      %p103 = scmp.eq.s32.totalorder %s16, 0
      %p104 = por %p102, %p103
      %p105 = scmp.ne.s32.totalorder %s94, %s97
      %p106 = scmp.eq.s32.totalorder %s21, 1
      %p107 = por %p105, %p106
      %p108 = scmp.ne.s32.totalorder %s97, %s98
      %p109 = scmp.eq.s32.totalorder %s21, 0
      %p110 = por %p108, %p109
      %p111 = scmp.ne.s32.totalorder %s97, %s98
      %p112 = scmp.eq.s32.totalorder %s22, 1
      %p113 = por %p111, %p112
      %p115 = scmp.ne.s32.totalorder %s98, %s114
      %p116 = scmp.eq.s32.totalorder %s22, 0
      %p117 = por %p115, %p116
      %p118 = scmp.le.s32.totalorder 1, %s16
      %p119 = scmp.lt.s32.totalorder %s16, 3
      %p120 = pnand %p118, %p119
      %p121 = pneg %p120
      // Predicated region
      $region9: #{tpu_custom_call.1} parent=5 // pred_check
        _
      $region10: #{tpu_custom_call.1} parent=5 // pred_check_branch
        %123 = sbr.rel (%p120) target = $region12
      $region11: #{tpu_custom_call.1} parent=5 // pred_region
        %s124 = ssub.s32 %s16, 1
        // Predicated region
        $region13: #{tpu_custom_call.1} parent=11 // pred_check
          %p125 = pneg %p63
        $region14: #{tpu_custom_call.1} parent=11 // pred_check_branch
          %127 = sbr.rel (%p125) target = $region16
        $region15: #{tpu_custom_call.1} parent=11 // pred_region
          %s129 = ssub.s32 6656, 6656
          %130 = vsyncadd [#allocation6], %s129
          %s131 = sshll.u32 [#allocation5], 4
          %s132 = int_to_ptr.vmem [resolvable:$true] %s131
          %137 = dma.hbm_to_vmem [thread:$0]  %s1, 6656, %s132, [#allocation6], 128, 128, 8
        $region16: #{tpu_custom_call.1} parent=11 // pred_fallthru
          _
        // Predicated region
        $region17: #{tpu_custom_call.1} parent=11 // pred_check
          %p138 = pneg %p84
        $region18: #{tpu_custom_call.1} parent=11 // pred_check_branch
          %140 = sbr.rel (%p138) target = $region20
        $region19: #{tpu_custom_call.1} parent=11 // pred_region
          _
        $region20: #{tpu_custom_call.1} parent=11 // pred_fallthru
          _
      $region12: #{tpu_custom_call.1} parent=5 // pred_fallthru
        _
      %p141 = scmp.lt.s32.totalorder %s16, 2
      // Predicated region
      $region21: #{tpu_custom_call.1} parent=5 // pred_check
        %p142 = pneg %p141
      $region22: #{tpu_custom_call.1} parent=5 // pred_check_branch
        %144 = sbr.rel (%p142) target = $region24
      $region23: #{tpu_custom_call.1} parent=5 // pred_region
        // Predicated region
        $region25: #{tpu_custom_call.1} parent=23 // pred_check
          %p145 = pneg %p36
        $region26: #{tpu_custom_call.1} parent=23 // pred_check_branch
          %147 = sbr.rel (%p145) target = $region28
        $region27: #{tpu_custom_call.1} parent=23 // pred_region
          %s148 = sand.u32 %s26, 1
          %s149 = scalar_lea.sflag [#allocation3], %s148
          %s150 = sand.u32 %s26, 1
          %s151 = smul.addr %s150, 8
          %s152 = scalar_lea.vmem [#allocation2], %s151
          %s154 = ssub.s32 128, 128
          %155 = vsyncadd %s149, %s154
          %s156 = smul.addr %s16, 128
          %s157 = scalar_lea.hbm %s0, %s156
          %s159 = sshll.u32 %s152, 4
          %s160 = int_to_ptr.vmem [resolvable:$true] %s159
          %162 = dma.hbm_to_vmem [thread:$0]  %s157, 128, %s160, %s149
        $region28: #{tpu_custom_call.1} parent=23 // pred_fallthru
          _
      $region24: #{tpu_custom_call.1} parent=5 // pred_fallthru
        _
      %p163 = scmp.le.s32.totalorder 1, %s16
      %p164 = scmp.lt.s32.totalorder %s16, 3
      %p165 = pnand %p163, %p164
      %p166 = pneg %p165
      // Predicated region
      $region29: #{tpu_custom_call.1} parent=5 // pred_check
        _
      $region30: #{tpu_custom_call.1} parent=5 // pred_check_branch
        %168 = sbr.rel (%p165) target = $region32
      $region31: #{tpu_custom_call.1} parent=5 // pred_region
        %s169 = ssub.s32 %s16, 1
        %s170 = sand.u32 %s29, 1
        %s171 = scalar_lea.sflag [#allocation3], %s170
        %s172 = sand.u32 %s29, 1
        %s173 = smul.addr %s172, 8
        %s174 = scalar_lea.vmem [#allocation2], %s173
        // Predicated region
        $region33: #{tpu_custom_call.1} parent=31 // pred_check
          %p175 = pneg %p42
        $region34: #{tpu_custom_call.1} parent=31 // pred_check_branch
          %177 = sbr.rel (%p175) target = $region36
        $region35: #{tpu_custom_call.1} parent=31 // pred_region
          %178 = dma.done %s171, 128
        $region36: #{tpu_custom_call.1} parent=31 // pred_fallthru
          _
        // Predicated region
        $region37: #{tpu_custom_call.1} parent=31 // pred_check
          %p179 = pneg %p63
        $region38: #{tpu_custom_call.1} parent=31 // pred_check_branch
          %181 = sbr.rel (%p179) target = $region40
        $region39: #{tpu_custom_call.1} parent=31 // pred_region
          %182 = dma.done [#allocation6], 6656
        $region40: #{tpu_custom_call.1} parent=31 // pred_fallthru
          _
        %s183 = sand.u32 %s29, 1
        %s184 = scalar_lea.sflag [#allocation3], %s183
        %s185 = sand.u32 %s29, 1
        %s186 = smul.addr %s185, 8
        %s187 = scalar_lea.vmem [#allocation2], %s186
        %p188 = pneg %p42
        %p189 = pneg %p39
        %p190 = pneg %p63
        %p191 = pneg %p60
        %p192 = pneg %p84
        %p193 = pneg %p81
        %p194 = pneg %p110
        %p195 = pneg %p107
        %s196 = sand.u32 %s97, 1
        %s197 = scalar_lea.sflag [#allocation4], %s196
        %s198 = sand.u32 %s97, 1
        %s199 = smul.addr %s198, 8
        %s200 = scalar_lea.vmem [#allocation7], %s199
        %v201 = vld [vmem:[%s174] sm:$0xff]
        %v202 = vld [vmem:[#allocation5] sm:$0xff]
        %v203 = vld [vmem:[#allocation5 + $0x8] sm:$0xff]
        %v204 = vld [vmem:[#allocation5 + $0x10] sm:$0xff]
        %v205 = vld [vmem:[#allocation5 + $0x18] sm:$0xff]
        %v206 = vld [vmem:[%s2] sm:$0x1]
        %v207 = vlaneseq
        %v208 = vshrl.u32 %v207, 7
        %v209 = vsub.s32 0, %v208
        %v210 = vrot.slane %v206, %v209
        %vm211 = vcmask 261120
        %v213 = vsel %vm211, %v201, 0
        %215 = vmatprep.subr.mxu0 0.0
        %216 = vmatpush1.msra.mxu0 %v202
        %217 = vmatprep.subr.mxu0 0.0
        %218 = vmatpush1.msra.mxu0 %v203
        %219 = vmatprep.subr.mxu0 0.0
        %220 = vmatpush1.msra.mxu0 %v204
        %221 = vmatprep.subr.mxu0 0.0
        %222 = vmatpush1.msra.mxu0 %v205
        %223 = vmatprep.subr.mxu0 0.0
        %224 = vmatpush1.msra.mxu0 0.0
        %225 = vmatprep.subr.mxu0 0.0
        %226 = vmatpush1.msra.mxu0 0.0
        %227 = vmatprep.subr.mxu0 0.0
        %228 = vmatpush1.msra.mxu0 0.0
        %229 = vmatprep.subr.mxu0 0.0
        %230 = vmatpush1.msra.mxu0 0.0
        %231 = vmatprep.subr.mxu0 0.0
        %232 = vmatpush1.msra.mxu0 0.0
        %233 = vmatprep.subr.mxu0 0.0
        %234 = vmatpush1.msra.mxu0 0.0
        %235 = vmatprep.subr.mxu0 0.0
        %236 = vmatpush1.msra.mxu0 0.0
        %237 = vmatprep.subr.mxu0 0.0
        %238 = vmatpush1.msra.mxu0 0.0
        %239 = vmatprep.subr.mxu0 0.0
        %240 = vmatpush1.msra.mxu0 0.0
        %241 = vmatprep.subr.mxu0 0.0
        %242 = vmatpush1.msra.mxu0 0.0
        %243 = vmatprep.subr.mxu0 0.0
        %244 = vmatpush1.msra.mxu0 0.0
        %245 = vmatprep.subr.mxu0 0.0
        %246 = vmatpush1.msra.mxu0 0.0
        %247 = vmatprep.subr.mxu0 0.0
        %248 = vmatpush1.msra.mxu0 0.0
        %249 = vmatprep.subr.mxu0 0.0
        %250 = vmatpush1.msra.mxu0 0.0
        %251 = vmatprep.subr.mxu0 0.0
        %252 = vmatpush1.msra.mxu0 0.0
        %253 = vmatprep.subr.mxu0 0.0
        %254 = vmatpush1.msra.mxu0 0.0
        %255 = vmatprep.subr.mxu0 0.0
        %256 = vmatpush1.msra.mxu0 0.0
        %257 = vmatprep.subr.mxu0 0.0
        %258 = vmatpush1.msra.mxu0 0.0
        %259 = vmatprep.subr.mxu0 0.0
        %260 = vmatpush1.msra.mxu0 0.0
        %261 = vmatprep.subr.mxu0 0.0
        %262 = vmatpush1.msra.mxu0 0.0
        %263 = vmatprep.subr.mxu0 0.0
        %264 = vmatpush1.msra.mxu0 0.0
        %265 = vmatprep.subr.mxu0 0.0
        %266 = vmatpush1.msra.mxu0 0.0
        %267 = vmatprep.subr.mxu0 0.0
        %268 = vmatpush1.msra.mxu0 0.0
        %269 = vmatprep.subr.mxu0 0.0
        %270 = vmatpush1.msra.mxu0 0.0
        %271 = vmatprep.subr.mxu0 0.0
        %272 = vmatpush1.msra.mxu0 0.0
        %273 = vmatprep.subr.mxu0 0.0
        %274 = vmatpush1.msra.mxu0 0.0
        %275 = vmatprep.subr.mxu0 0.0
        %276 = vmatpush1.msra.mxu0 0.0
        %277 = vmatprep.subr.mxu0 0.0
        %278 = vmatpush1.msra.mxu0 0.0
        %279 = vmatprep.mubr.f32.mxu0 0.0
        %280 = vmatmul.mubr.f32.gmra.mrb[0].mxu0 %v213
        %v281 = vpop.f32.mrb[0].mxu0
        %v282 = vadd.f32 %v210, %v281
        %v283 = vpop.f32.mrb[0].mxu0
        %284 = vdwg.mxu0
        %v285 = vmax.f32 %v282, 0.0
        %v286 = vld [vmem:[#allocation5 + $0x20] sm:$0xff]
        %v287 = vld [vmem:[#allocation5 + $0x28] sm:$0xff]
        %v288 = vld [vmem:[#allocation5 + $0x30] sm:$0xff]
        %v289 = vld [vmem:[#allocation5 + $0x38] sm:$0xff]
        %v290 = vld [vmem:[#allocation5 + $0x40] sm:$0xff]
        %v291 = vld [vmem:[#allocation5 + $0x48] sm:$0xff]
        %v292 = vld [vmem:[#allocation5 + $0x50] sm:$0xff]
        %v293 = vld [vmem:[#allocation5 + $0x58] sm:$0xff]
        %v294 = vld [vmem:[#allocation5 + $0x60] sm:$0xff]
        %v295 = vld [vmem:[#allocation5 + $0x68] sm:$0xff]
        %v296 = vld [vmem:[#allocation5 + $0x70] sm:$0xff]
        %v297 = vld [vmem:[#allocation5 + $0x78] sm:$0xff]
        %v298 = vld [vmem:[#allocation5 + $0x80] sm:$0xff]
        %v299 = vld [vmem:[#allocation5 + $0x88] sm:$0xff]
        %v300 = vld [vmem:[#allocation5 + $0x90] sm:$0xff]
        %v301 = vld [vmem:[#allocation5 + $0x98] sm:$0xff]
        %v302 = vld [vmem:[%s2 + $0x1] sm:$0x1]
        %v303 = vlaneseq
        %v304 = vshrl.u32 %v303, 7
        %v305 = vsub.s32 0, %v304
        %v306 = vrot.slane %v302, %v305
        %307 = vmatprep.subr.mxu0 0.0
        %308 = vmatpush1.msra.mxu0 %v286
        %309 = vmatprep.subr.mxu0 0.0
        %310 = vmatpush1.msra.mxu0 %v287
        %311 = vmatprep.subr.mxu0 0.0
        %312 = vmatpush1.msra.mxu0 %v288
        %313 = vmatprep.subr.mxu0 0.0
        %314 = vmatpush1.msra.mxu0 %v289
        %315 = vmatprep.subr.mxu0 0.0
        %316 = vmatpush1.msra.mxu0 %v290
        %317 = vmatprep.subr.mxu0 0.0
        %318 = vmatpush1.msra.mxu0 %v291
        %319 = vmatprep.subr.mxu0 0.0
        %320 = vmatpush1.msra.mxu0 %v292
        %321 = vmatprep.subr.mxu0 0.0
        %322 = vmatpush1.msra.mxu0 %v293
        %323 = vmatprep.subr.mxu0 0.0
        %324 = vmatpush1.msra.mxu0 %v294
        %325 = vmatprep.subr.mxu0 0.0
        %326 = vmatpush1.msra.mxu0 %v295
        %327 = vmatprep.subr.mxu0 0.0
        %328 = vmatpush1.msra.mxu0 %v296
        %329 = vmatprep.subr.mxu0 0.0
        %330 = vmatpush1.msra.mxu0 %v297
        %331 = vmatprep.subr.mxu0 0.0
        %332 = vmatpush1.msra.mxu0 %v298
        %333 = vmatprep.subr.mxu0 0.0
        %334 = vmatpush1.msra.mxu0 %v299
        %335 = vmatprep.subr.mxu0 0.0
        %336 = vmatpush1.msra.mxu0 %v300
        %337 = vmatprep.subr.mxu0 0.0
        %338 = vmatpush1.msra.mxu0 %v301
        %339 = vmatprep.subr.mxu0 0.0
        %340 = vmatpush1.msra.mxu0 0.0
        %341 = vmatprep.subr.mxu0 0.0
        %342 = vmatpush1.msra.mxu0 0.0
        %343 = vmatprep.subr.mxu0 0.0
        %344 = vmatpush1.msra.mxu0 0.0
        %345 = vmatprep.subr.mxu0 0.0
        %346 = vmatpush1.msra.mxu0 0.0
        %347 = vmatprep.subr.mxu0 0.0
        %348 = vmatpush1.msra.mxu0 0.0
        %349 = vmatprep.subr.mxu0 0.0
        %350 = vmatpush1.msra.mxu0 0.0
        %351 = vmatprep.subr.mxu0 0.0
        %352 = vmatpush1.msra.mxu0 0.0
        %353 = vmatprep.subr.mxu0 0.0
        %354 = vmatpush1.msra.mxu0 0.0
        %355 = vmatprep.subr.mxu0 0.0
        %356 = vmatpush1.msra.mxu0 0.0
        %357 = vmatprep.subr.mxu0 0.0
        %358 = vmatpush1.msra.mxu0 0.0
        %359 = vmatprep.subr.mxu0 0.0
        %360 = vmatpush1.msra.mxu0 0.0
        %361 = vmatprep.subr.mxu0 0.0
        %362 = vmatpush1.msra.mxu0 0.0
        %363 = vmatprep.subr.mxu0 0.0
        %364 = vmatpush1.msra.mxu0 0.0
        %365 = vmatprep.subr.mxu0 0.0
        %366 = vmatpush1.msra.mxu0 0.0
        %367 = vmatprep.subr.mxu0 0.0
        %368 = vmatpush1.msra.mxu0 0.0
        %369 = vmatprep.subr.mxu0 0.0
        %370 = vmatpush1.msra.mxu0 0.0
        %371 = vmatprep.mubr.f32.mxu0 0.0
        %372 = vmatmul.mubr.f32.gmra.mrb[0].mxu0 %v285
        %v373 = vpop.f32.mrb[0].mxu0
        %v374 = vadd.f32 %v306, %v373
        %v375 = vpop.f32.mrb[0].mxu0
        %376 = vdwg.mxu0
        %v377 = vmax.f32 %v374, 0.0
        %v378 = vld [vmem:[#allocation5 + $0xa0] sm:$0xff]
        %v379 = vld [vmem:[#allocation5 + $0xa8] sm:$0xff]
        %v380 = vld [vmem:[#allocation5 + $0xb0] sm:$0xff]
        %v381 = vld [vmem:[#allocation5 + $0xb8] sm:$0xff]
        %v382 = vld [vmem:[#allocation5 + $0xc0] sm:$0xff]
        %v383 = vld [vmem:[#allocation5 + $0xc8] sm:$0xff]
        %v384 = vld [vmem:[#allocation5 + $0xd0] sm:$0xff]
        %v385 = vld [vmem:[#allocation5 + $0xd8] sm:$0xff]
        %v386 = vld [vmem:[#allocation5 + $0xe0] sm:$0xff]
        %v387 = vld [vmem:[#allocation5 + $0xe8] sm:$0xff]
        %v388 = vld [vmem:[#allocation5 + $0xf0] sm:$0xff]
        %v389 = vld [vmem:[#allocation5 + $0xf8] sm:$0xff]
        %v390 = vld [vmem:[#allocation5 + $0x100] sm:$0xff]
        %v391 = vld [vmem:[#allocation5 + $0x108] sm:$0xff]
        %v392 = vld [vmem:[#allocation5 + $0x110] sm:$0xff]
        %v393 = vld [vmem:[#allocation5 + $0x118] sm:$0xff]
        %v394 = vld [vmem:[%s2 + $0x2] sm:$0x1]
        %v395 = vlaneseq
        %v396 = vshrl.u32 %v395, 7
        %v397 = vsub.s32 0, %v396
        %v398 = vrot.slane %v394, %v397
        %399 = vmatprep.subr.mxu0 0.0
        %400 = vmatpush1.msra.mxu0 %v378
        %401 = vmatprep.subr.mxu0 0.0
        %402 = vmatpush1.msra.mxu0 %v379
        %403 = vmatprep.subr.mxu0 0.0
        %404 = vmatpush1.msra.mxu0 %v380
        %405 = vmatprep.subr.mxu0 0.0
        %406 = vmatpush1.msra.mxu0 %v381
        %407 = vmatprep.subr.mxu0 0.0
        %408 = vmatpush1.msra.mxu0 %v382
        %409 = vmatprep.subr.mxu0 0.0
        %410 = vmatpush1.msra.mxu0 %v383
        %411 = vmatprep.subr.mxu0 0.0
        %412 = vmatpush1.msra.mxu0 %v384
        %413 = vmatprep.subr.mxu0 0.0
        %414 = vmatpush1.msra.mxu0 %v385
        %415 = vmatprep.subr.mxu0 0.0
        %416 = vmatpush1.msra.mxu0 %v386
        %417 = vmatprep.subr.mxu0 0.0
        %418 = vmatpush1.msra.mxu0 %v387
        %419 = vmatprep.subr.mxu0 0.0
        %420 = vmatpush1.msra.mxu0 %v388
        %421 = vmatprep.subr.mxu0 0.0
        %422 = vmatpush1.msra.mxu0 %v389
        %423 = vmatprep.subr.mxu0 0.0
        %424 = vmatpush1.msra.mxu0 %v390
        %425 = vmatprep.subr.mxu0 0.0
        %426 = vmatpush1.msra.mxu0 %v391
        %427 = vmatprep.subr.mxu0 0.0
        %428 = vmatpush1.msra.mxu0 %v392
        %429 = vmatprep.subr.mxu0 0.0
        %430 = vmatpush1.msra.mxu0 %v393
        %431 = vmatprep.subr.mxu0 0.0
        %432 = vmatpush1.msra.mxu0 0.0
        %433 = vmatprep.subr.mxu0 0.0
        %434 = vmatpush1.msra.mxu0 0.0
        %435 = vmatprep.subr.mxu0 0.0
        %436 = vmatpush1.msra.mxu0 0.0
        %437 = vmatprep.subr.mxu0 0.0
        %438 = vmatpush1.msra.mxu0 0.0
        %439 = vmatprep.subr.mxu0 0.0
        %440 = vmatpush1.msra.mxu0 0.0
        %441 = vmatprep.subr.mxu0 0.0
        %442 = vmatpush1.msra.mxu0 0.0
        %443 = vmatprep.subr.mxu0 0.0
        %444 = vmatpush1.msra.mxu0 0.0
        %445 = vmatprep.subr.mxu0 0.0
        %446 = vmatpush1.msra.mxu0 0.0
        %447 = vmatprep.subr.mxu0 0.0
        %448 = vmatpush1.msra.mxu0 0.0
        %449 = vmatprep.subr.mxu0 0.0
        %450 = vmatpush1.msra.mxu0 0.0
        %451 = vmatprep.subr.mxu0 0.0
        %452 = vmatpush1.msra.mxu0 0.0
        %453 = vmatprep.subr.mxu0 0.0
        %454 = vmatpush1.msra.mxu0 0.0
        %455 = vmatprep.subr.mxu0 0.0
        %456 = vmatpush1.msra.mxu0 0.0
        %457 = vmatprep.subr.mxu0 0.0
        %458 = vmatpush1.msra.mxu0 0.0
        %459 = vmatprep.subr.mxu0 0.0
        %460 = vmatpush1.msra.mxu0 0.0
        %461 = vmatprep.subr.mxu0 0.0
        %462 = vmatpush1.msra.mxu0 0.0
        %463 = vmatprep.mubr.f32.mxu0 0.0
        %464 = vmatmul.mubr.f32.gmra.mrb[0].mxu0 %v377
        %v465 = vpop.f32.mrb[0].mxu0
        %v466 = vadd.f32 %v398, %v465
        %v467 = vpop.f32.mrb[0].mxu0
        %468 = vdwg.mxu0
        %v469 = vmax.f32 %v466, 0.0
        %v470 = vld [vmem:[#allocation5 + $0x120] sm:$0xff]
        %v471 = vld [vmem:[#allocation5 + $0x128] sm:$0xff]
        %v472 = vld [vmem:[#allocation5 + $0x130] sm:$0xff]
        %v473 = vld [vmem:[#allocation5 + $0x138] sm:$0xff]
        %v474 = vld [vmem:[#allocation5 + $0x140] sm:$0xff]
        %v475 = vld [vmem:[#allocation5 + $0x148] sm:$0xff]
        %v476 = vld [vmem:[#allocation5 + $0x150] sm:$0xff]
        %v477 = vld [vmem:[#allocation5 + $0x158] sm:$0xff]
        %v478 = vld [vmem:[#allocation5 + $0x160] sm:$0xff]
        %v479 = vld [vmem:[#allocation5 + $0x168] sm:$0xff]
        %v480 = vld [vmem:[#allocation5 + $0x170] sm:$0xff]
        %v481 = vld [vmem:[#allocation5 + $0x178] sm:$0xff]
        %v482 = vld [vmem:[#allocation5 + $0x180] sm:$0xff]
        %v483 = vld [vmem:[#allocation5 + $0x188] sm:$0xff]
        %v484 = vld [vmem:[#allocation5 + $0x190] sm:$0xff]
        %v485 = vld [vmem:[#allocation5 + $0x198] sm:$0xff]
        %v486 = vld [vmem:[%s2 + $0x3] sm:$0x1]
        %v487 = vlaneseq
        %v488 = vshrl.u32 %v487, 7
        %v489 = vsub.s32 0, %v488
        %v490 = vrot.slane %v486, %v489
        %491 = vmatprep.subr.mxu0 0.0
        %492 = vmatpush1.msra.mxu0 %v470
        %493 = vmatprep.subr.mxu0 0.0
        %494 = vmatpush1.msra.mxu0 %v471
        %495 = vmatprep.subr.mxu0 0.0
        %496 = vmatpush1.msra.mxu0 %v472
        %497 = vmatprep.subr.mxu0 0.0
        %498 = vmatpush1.msra.mxu0 %v473
        %499 = vmatprep.subr.mxu0 0.0
        %500 = vmatpush1.msra.mxu0 %v474
        %501 = vmatprep.subr.mxu0 0.0
        %502 = vmatpush1.msra.mxu0 %v475
        %503 = vmatprep.subr.mxu0 0.0
        %504 = vmatpush1.msra.mxu0 %v476
        %505 = vmatprep.subr.mxu0 0.0
        %506 = vmatpush1.msra.mxu0 %v477
        %507 = vmatprep.subr.mxu0 0.0
        %508 = vmatpush1.msra.mxu0 %v478
        %509 = vmatprep.subr.mxu0 0.0
        %510 = vmatpush1.msra.mxu0 %v479
        %511 = vmatprep.subr.mxu0 0.0
        %512 = vmatpush1.msra.mxu0 %v480
        %513 = vmatprep.subr.mxu0 0.0
        %514 = vmatpush1.msra.mxu0 %v481
        %515 = vmatprep.subr.mxu0 0.0
        %516 = vmatpush1.msra.mxu0 %v482
        %517 = vmatprep.subr.mxu0 0.0
        %518 = vmatpush1.msra.mxu0 %v483
        %519 = vmatprep.subr.mxu0 0.0
        %520 = vmatpush1.msra.mxu0 %v484
        %521 = vmatprep.subr.mxu0 0.0
        %522 = vmatpush1.msra.mxu0 %v485
        %523 = vmatprep.subr.mxu0 0.0
        %524 = vmatpush1.msra.mxu0 0.0
        %525 = vmatprep.subr.mxu0 0.0
        %526 = vmatpush1.msra.mxu0 0.0
        %527 = vmatprep.subr.mxu0 0.0
        %528 = vmatpush1.msra.mxu0 0.0
        %529 = vmatprep.subr.mxu0 0.0
        %530 = vmatpush1.msra.mxu0 0.0
        %531 = vmatprep.subr.mxu0 0.0
        %532 = vmatpush1.msra.mxu0 0.0
        %533 = vmatprep.subr.mxu0 0.0
        %534 = vmatpush1.msra.mxu0 0.0
        %535 = vmatprep.subr.mxu0 0.0
        %536 = vmatpush1.msra.mxu0 0.0
        %537 = vmatprep.subr.mxu0 0.0
        %538 = vmatpush1.msra.mxu0 0.0
        %539 = vmatprep.subr.mxu0 0.0
        %540 = vmatpush1.msra.mxu0 0.0
        %541 = vmatprep.subr.mxu0 0.0
        %542 = vmatpush1.msra.mxu0 0.0
        %543 = vmatprep.subr.mxu0 0.0
        %544 = vmatpush1.msra.mxu0 0.0
        %545 = vmatprep.subr.mxu0 0.0
        %546 = vmatpush1.msra.mxu0 0.0
        %547 = vmatprep.subr.mxu0 0.0
        %548 = vmatpush1.msra.mxu0 0.0
        %549 = vmatprep.subr.mxu0 0.0
        %550 = vmatpush1.msra.mxu0 0.0
        %551 = vmatprep.subr.mxu0 0.0
        %552 = vmatpush1.msra.mxu0 0.0
        %553 = vmatprep.subr.mxu0 0.0
        %554 = vmatpush1.msra.mxu0 0.0
        %555 = vmatprep.mubr.f32.mxu0 0.0
        %556 = vmatmul.mubr.f32.gmra.mrb[0].mxu0 %v469
        %v557 = vpop.f32.mrb[0].mxu0
        %v558 = vadd.f32 %v490, %v557
        %v559 = vpop.f32.mrb[0].mxu0
        %560 = vdwg.mxu0
        %561 = vst.msk [vmem:[%s200] sm:$0xff] %vm211, %v558
        %s562 = sand.u32 %s97, 1
        %s563 = scalar_lea.sflag [#allocation4], %s562
        %s564 = sand.u32 %s97, 1
        %s565 = smul.addr %s564, 8
        %s566 = scalar_lea.vmem [#allocation7], %s565
        // Predicated region
        $region41: #{tpu_custom_call.1} parent=31 // pred_check
          %p567 = pneg %p107
        $region42: #{tpu_custom_call.1} parent=31 // pred_check_branch
          %569 = sbr.rel (%p567) target = $region44
        $region43: #{tpu_custom_call.1} parent=31 // pred_region
          %s571 = ssub.s32 128, 128
          %572 = vsyncadd %s563, %s571
          %s573 = smul.addr %s21, 128
          %s574 = scalar_lea.hbm %s3, %s573
          %s576 = sshll.u32 %s566, 4
          %s577 = int_to_ptr.vmem [resolvable:$true] %s576
          %579 = dma.vmem_to_hbm [thread:$0]  %s577, 128, %s574, %s563
        $region44: #{tpu_custom_call.1} parent=31 // pred_fallthru
          _
      $region32: #{tpu_custom_call.1} parent=5 // pred_fallthru
        _
      %p580 = scmp.le.s32.totalorder 2, %s16
      // Predicated region
      $region45: #{tpu_custom_call.1} parent=5 // pred_check
        %p581 = pneg %p580
      $region46: #{tpu_custom_call.1} parent=5 // pred_check_branch
        %583 = sbr.rel (%p581) target = $region48
      $region47: #{tpu_custom_call.1} parent=5 // pred_region
        %s584 = ssub.s32 %s16, 2
        // Predicated region
        $region49: #{tpu_custom_call.1} parent=47 // pred_check
          %p585 = pneg %p113
        $region50: #{tpu_custom_call.1} parent=47 // pred_check_branch
          %587 = sbr.rel (%p585) target = $region52
        $region51: #{tpu_custom_call.1} parent=47 // pred_region
          %s588 = sand.u32 %s98, 1
          %s589 = scalar_lea.sflag [#allocation4], %s588
          %s590 = sand.u32 %s98, 1
          %s591 = smul.addr %s590, 8
          %s592 = scalar_lea.vmem [#allocation7], %s591
          %593 = dma.done %s589, 128
        $region52: #{tpu_custom_call.1} parent=47 // pred_fallthru
          _
      $region48: #{tpu_custom_call.1} parent=5 // pred_fallthru
        _
    $region6: #{tpu_custom_call.1} parent=1 // loop_footer
      %s20 = sadd.s32 1, %s16
    $region7: #{tpu_custom_call.1} parent=1 // loop_footer_branch
      %15 = sbr.rel target = $region3
    $region8: #{tpu_custom_call.1} parent=1 // loop_exit
      _
    %594 = vsyncpa [#allocation3], 1
    %s595 = scalar_lea.sflag [#allocation3], 1
    %596 = vsyncpa %s595, 1
    %597 = vsyncpa [#allocation6], 1
    %598 = vsyncpa [#allocation4], 1
    %s599 = scalar_lea.sflag [#allocation4], 1
    %600 = vsyncpa %s599, 1

</llo_original>
